<compile_context>
chip_gen: v7x
topology: tpu7x:2x2x1
jax: 0.10.0
libtpu: 0.0.40
codegen_flags: <defaults>
</compile_context>

<pallas_src>
import functools

import jax
import jax.numpy as jnp
from jax.experimental import pallas as pl
from jax.experimental.pallas import tpu as pltpu


def _rmsnorm_kernel(x_ref, w_ref, out_ref, *, eps):
    # No-residual path: normalized output only (residual == input, returned by wrapper).
    hf = x_ref[...].astype(jnp.float32)
    var = jnp.mean(hf * hf, axis=-1, keepdims=True)
    normed = hf * jax.lax.rsqrt(var + eps)
    # torch semantics: weight * hidden.to(weight.dtype)
    out_ref[...] = (w_ref[...] * normed.astype(w_ref.dtype)).astype(out_ref.dtype)


def _rmsnorm_residual_kernel(x_ref, r_ref, w_ref, out_ref, res_ref, *, eps):
    # Residual path: hidden_states += residual (in input dtype); new residual = sum.
    h = x_ref[...] + r_ref[...]
    res_ref[...] = h
    hf = h.astype(jnp.float32)
    var = jnp.mean(hf * hf, axis=-1, keepdims=True)
    normed = hf * jax.lax.rsqrt(var + eps)
    out_ref[...] = (w_ref[...] * normed.astype(w_ref.dtype)).astype(out_ref.dtype)


def _vmem_capacity_bytes():
    """Generation-aware VMEM capacity (64 MiB/TC on v7x, 128 MiB on v5e/v6e)."""
    try:
        info = pltpu.get_tpu_info()
        cap = getattr(info, "vmem_capacity_bytes", None)
        if cap:
            return int(cap)
    except Exception:
        pass
    return 64 << 20  # conservative fallback (v7x per-TensorCore)


def _round_up(x, m):
    return -(-x // m) * m


def fast_rms_norm(hidden_states, weight, eps, residual=None, *, target_tile_bytes=4 << 20):
    """Returns (normed, residual) exactly like FastRMSNorm.forward."""
    S, H = hidden_states.shape
    assert weight.shape == (H,)
    # NOTE: H should be a multiple of 128 in real deployments to keep stores
    # lane-dense; here the block covers the full H so small demo sizes are fine.

    in_dtype = hidden_states.dtype
    isz = jnp.dtype(in_dtype).itemsize
    wsz = jnp.dtype(weight.dtype).itemsize
    # Sublane packing: 8 rows per vreg for 32-bit, 16 for 16-bit, 32 for 8-bit.
    sublane = max(8, 32 // isz)

    has_res = residual is not None

    # Per-row bytes of the double-buffered in/out tiles plus the f32 temporaries
    # (hf and normed ~ 2 * 4 bytes per element) the kernel materializes.
    if has_res:
        per_row = 2 * (3 * isz + wsz) * H + 2 * 4 * H
    else:
        per_row = 2 * (isz + wsz) * H + 2 * 4 * H
    weight_bytes = 2 * H * wsz  # resident (1, H) weight tile, double-buffered

    vmem_cap = _vmem_capacity_bytes()
    vmem_budget = max(16 << 20, vmem_cap - (8 << 20))  # leave ~8 MiB headroom

    # Rows per block: ~target_tile_bytes per input tile, sublane-aligned, clamped
    # by the VMEM budget and by the (rounded-up) sequence length.
    br = max(sublane, (target_tile_bytes // (H * isz)) // sublane * sublane)
    max_br = max(sublane, ((vmem_budget - weight_bytes) // per_row) // sublane * sublane)
    br = min(br, max_br, _round_up(S, sublane))

    # Keep >=2 grid steps when possible so the row axis can shard across v7x's
    # two TensorCores (rows are independent; an extra step costs ~0.35 us).
    if -(-S // br) < 2 and S >= 2 * sublane:
        br = max(sublane, _round_up(-(-S // 2), sublane))

    grid = (pl.cdiv(S, br),)

    est = per_row * br + weight_bytes
    vmem_limit = int(min(vmem_budget, max(est + (4 << 20), 32 << 20)))

    row_spec = pl.BlockSpec((br, H), lambda i: (i, 0))
    w_spec = pl.BlockSpec((1, H), lambda i: (0, 0))  # constant block; re-fetch is elided
    w2d = weight.reshape(1, H)

    compiler_params = pltpu.CompilerParams(
        dimension_semantics=("parallel",),
        vmem_limit_bytes=vmem_limit,
    )

    if not has_res:
        out = pl.pallas_call(
            functools.partial(_rmsnorm_kernel, eps=eps),
            out_shape=jax.ShapeDtypeStruct((S, H), weight.dtype),
            grid_spec=pltpu.PrefetchScalarGridSpec(
                num_scalar_prefetch=0,
                grid=grid,
                in_specs=[row_spec, w_spec],
                out_specs=pl.BlockSpec((br, H), lambda i: (i, 0)),
            ),
            compiler_params=compiler_params,
        )(hidden_states, w2d)
        # Residual is the (unmodified) input — no extra HBM writeback needed.
        return out, hidden_states

    # Donate HBM buffers where shapes/dtypes match: x -> res, and r -> out when
    # the weight dtype equals the input dtype.
    io_aliases = {0: 1}
    if weight.dtype == in_dtype:
        io_aliases[1] = 0

    out, res = pl.pallas_call(
        functools.partial(_rmsnorm_residual_kernel, eps=eps),
        out_shape=(
            jax.ShapeDtypeStruct((S, H), weight.dtype),  # normalized output
            jax.ShapeDtypeStruct((S, H), in_dtype),      # residual (post-add)
        ),
        grid_spec=pltpu.PrefetchScalarGridSpec(
            num_scalar_prefetch=0,
            grid=grid,
            in_specs=[row_spec, row_spec, w_spec],
            out_specs=[
                pl.BlockSpec((br, H), lambda i: (i, 0)),
                pl.BlockSpec((br, H), lambda i: (i, 0)),
            ],
        ),
        compiler_params=compiler_params,
        input_output_aliases=io_aliases,
    )(hidden_states, residual, w2d)
    return out, res


def _reference(hidden_states, weight, eps, residual=None):
    if residual is not None:
        hidden_states = hidden_states + residual
    res = hidden_states
    hf = hidden_states.astype(jnp.float32)
    var = jnp.mean(hf * hf, axis=-1, keepdims=True)
    hf = hf * jax.lax.rsqrt(var + eps)
    return weight * hf.astype(weight.dtype), res


if __name__ == "__main__":
    key = jax.random.PRNGKey(0)
    k1, k2, k3 = jax.random.split(key, 3)

    S, H = 8, 32
    eps = 1e-6

    x = jax.random.normal(k1, (S, H), dtype=jnp.float32)
    residual = jax.random.normal(k2, (S, H), dtype=jnp.float32)
    # Deterministic "checkpoint" weight (module __init__ takes a weight of shape (H,)).
    weight = 1.0 + 0.01 * jax.random.normal(k3, (H,), dtype=jnp.float32)

    # Compute references before the kernel calls (the residual path donates its
    # input buffers via input_output_aliases).
    ref_out1, ref_res1 = _reference(x, weight, eps, residual=None)
    ref_out2, ref_res2 = _reference(x, weight, eps, residual=residual)

    # No-residual path.
    out1, res1 = fast_rms_norm(x, weight, eps, residual=None)
    jax.block_until_ready((out1, res1))
    assert jnp.allclose(out1, ref_out1, atol=1e-5, rtol=1e-5)
    assert jnp.allclose(res1, ref_res1, atol=1e-5, rtol=1e-5)

    # Residual path.
    out2, res2 = fast_rms_norm(x, weight, eps, residual=residual)
    jax.block_until_ready((out2, res2))
    assert jnp.allclose(out2, ref_out2, atol=1e-5, rtol=1e-5)
    assert jnp.allclose(res2, ref_res2, atol=1e-5, rtol=1e-5)

    # Ragged seq length: exercises the masked tail block (no wrapper padding)
    # and the >=2-step grid split.
    S2 = 300
    x3 = jax.random.normal(k1, (S2, H), dtype=jnp.float32)
    r3 = jax.random.normal(k2, (S2, H), dtype=jnp.float32)
    ref_out3, ref_res3 = _reference(x3, weight, eps, residual=r3)
    out3, res3 = fast_rms_norm(x3, weight, eps, residual=r3)
    jax.block_until_ready((out3, res3))
    assert jnp.allclose(out3, ref_out3, atol=1e-5, rtol=1e-5)
    assert jnp.allclose(res3, ref_res3, atol=1e-5, rtol=1e-5)

    print("KERNEL_OK")
</pallas_src>

<mosaic_0001>
module attributes {stable_mosaic.version = 11 : i64} {
  func.func @_rmsnorm_kernel(%arg0: i32, %arg1: memref<8x32xf32, #tpu.memory_space<vmem>>, %arg2: memref<1x32xf32, #tpu.memory_space<vmem>>, %arg3: memref<8x32xf32, #tpu.memory_space<vmem>>) attributes {dimension_semantics = [#tpu.dimension_semantics<parallel>], iteration_bounds = array<i64: 1>, scalar_prefetch = 0 : i64, scratch_operands = 0 : i64, tpu.core_type = #tpu.core_type<tc>, window_params = [{transform_indices = @transform_0, window_bounds = array<i64: 8, 32>}, {pipeline_mode = #tpu.pipeline_mode<synchronous>, transform_indices = @transform_1, window_bounds = array<i64: 1, 32>}, {transform_indices = @transform_2, window_bounds = array<i64: 8, 32>}]} {
    %c0 = arith.constant 0 : index
    %c0_0 = arith.constant 0 : index
    %0 = vector.load %arg1[%c0, %c0_0] : memref<8x32xf32, #tpu.memory_space<vmem>>, vector<8x32xf32>
    %1 = arith.mulf %0, %0 : vector<8x32xf32>
    %cst = arith.constant dense<0.000000e+00> : vector<8xf32>
    %2 = vector.multi_reduction <add>, %1, %cst [1] : vector<8x32xf32> to vector<8xf32>
    %3 = vector.shape_cast %2 : vector<8xf32> to vector<8x1xf32>
    %cst_1 = arith.constant 3.200000e+01 : f32
    %4 = vector.broadcast %cst_1 : f32 to vector<8x1xf32>
    %5 = arith.divf %3, %4 : vector<8x1xf32>
    %cst_2 = arith.constant 9.99999997E-7 : f32
    %6 = vector.broadcast %cst_2 : f32 to vector<8x1xf32>
    %7 = arith.addf %5, %6 : vector<8x1xf32>
    %8 = math.rsqrt %7 : vector<8x1xf32>
    %9 = vector.broadcast %8 : vector<8x1xf32> to vector<8x32xf32>
    %10 = arith.mulf %0, %9 : vector<8x32xf32>
    %c0_3 = arith.constant 0 : index
    %c0_4 = arith.constant 0 : index
    %11 = vector.load %arg2[%c0_3, %c0_4] : memref<1x32xf32, #tpu.memory_space<vmem>>, vector<1x32xf32>
    %12 = vector.broadcast %11 : vector<1x32xf32> to vector<8x32xf32>
    %13 = arith.mulf %12, %10 : vector<8x32xf32>
    %c0_5 = arith.constant 0 : index
    %c0_6 = arith.constant 0 : index
    %14 = vector.load %arg3[%c0_5, %c0_6] : memref<8x32xf32, #tpu.memory_space<vmem>>, vector<8x32xf32>
    tpu.vector_store %arg3[%c0_5, %c0_6], %13 {strides = array<i32>} : memref<8x32xf32, #tpu.memory_space<vmem>>, vector<8x32xf32>,
    return
  }
  func.func @transform_0(%arg0: i32) -> (i32, i32) {
    %c0_i32 = arith.constant 0 : i32
    %c0_i32_0 = arith.constant 0 : i32
    return %arg0, %c0_i32 : i32, i32
  }
  func.func @transform_1(%arg0: i32) -> (i32, i32) {
    %c0_i32 = arith.constant 0 : i32
    %c0_i32_0 = arith.constant 0 : i32
    %c0_i32_1 = arith.constant 0 : i32
    return %c0_i32, %c0_i32_0 : i32, i32
  }
  func.func @transform_2(%arg0: i32) -> (i32, i32) {
    %c0_i32 = arith.constant 0 : i32
    %c0_i32_0 = arith.constant 0 : i32
    return %arg0, %c0_i32 : i32, i32
  }
}

</mosaic_0001>

<llo_original>
// kernel: tpu_custom_call.1
$region0: #{tpu_custom_call.1}
  #allocation0 [shape = 'u32[]', space=smem, size = 0x4, offset = 0x4, fixed_abs, tag = 'smem constant byte address 0x4 - core index']
  #allocation1 [shape = 'u32[144,128]{1,0:T(1,128)}', space=vmem, size = 0x12000, scoped, tag = 'internal scratch']
  %s0 = inlined_call_operand.hbm [shape: f32[8,32], index: 0, kind: input, shape index: {}]
  %s1 = inlined_call_operand.vmem [shape: f32[1,32], index: 1, kind: input, shape index: {}]
  %s2 = inlined_call_operand.hbm [shape: f32[8,32], index: 2, kind: output, shape index: {}]
  %s3 = sld [smem:[#allocation0]]
  $region22: #{tpu_custom_call.1} parent=0
    _
  %s5 = ssub.s32 1, %s3
  %s6 = scalar_select 0, %s5, %s3
  $region1: #{tpu_custom_call.1} parent=0
    #allocation2 [shape = 'u8[4096]{0}', space=vmem, size = 0x1000, scoped, tag = 'input window, operand 0, single buffered']
    #allocation3 [shape = 's32[1]{0}', space=sflag, size = 0x4, scoped, tag = 'scoped memory for tpu_custom_call.1']
    #allocation4 [shape = 's32[1]{0}', space=sflag, size = 0x4, scoped, tag = 'scoped memory for tpu_custom_call.1']
    #allocation5 [shape = 'u8[4096]{0}', space=vmem, size = 0x1000, scoped, tag = 'output window, operand 0, single buffered']
    %7 = vsyncpa [#allocation3], 0
    %8 = vsyncpa [#allocation4], 0
    // Predicated region
    $region2: #{tpu_custom_call.1} parent=1 // pred_check
      _
    $region3: #{tpu_custom_call.1} parent=1 // pred_check_branch
      %10 = sbr.rel (0) target = $region5
    $region4: #{tpu_custom_call.1} parent=1 // pred_region
      %s12 = ssub.s32 128, 128
      %13 = vsyncadd [#allocation3], %s12
      %s15 = sshll.u32 [#allocation2], 4
      %s16 = int_to_ptr.vmem [resolvable:$true] %s15
      %18 = dma.hbm_to_vmem [thread:$0]  %s0, 128, %s16, [#allocation3]
    $region5: #{tpu_custom_call.1} parent=1 // pred_fallthru
      _
    // Predicated region
    $region6: #{tpu_custom_call.1} parent=1 // pred_check
      _
    $region7: #{tpu_custom_call.1} parent=1 // pred_check_branch
      %20 = sbr.rel (0) target = $region9
    $region8: #{tpu_custom_call.1} parent=1 // pred_region
      _
    $region9: #{tpu_custom_call.1} parent=1 // pred_fallthru
      _
    // Predicated region
    $region10: #{tpu_custom_call.1} parent=1 // pred_check
      _
    $region11: #{tpu_custom_call.1} parent=1 // pred_check_branch
      %22 = sbr.rel (0) target = $region13
    $region12: #{tpu_custom_call.1} parent=1 // pred_region
      %23 = dma.done [#allocation3], 128
    $region13: #{tpu_custom_call.1} parent=1 // pred_fallthru
      _
    %v24 = vld [vmem:[#allocation2] sm:$0xff]
    %v25 = vmul.f32 %v24, %v24
    %vm26 = vcmask 261120
    %v27 = vsel %vm26, %v25, 0.0
    %28 = vadd.xlane.f32.xlu0 %v27
    %v29 = vpop.xlane.xlu0 %28
    %v30 = vrcp.pop 32.0
    %v31 = vmul.f32 %v29, %v30
    %v32 = vadd.f32 %v31, 1e-06
    %v33 = vrsqrt.pop %v32
    %v34 = vmul.f32 %v24, %v33
    %v35 = vld [vmem:[%s1] sm:$0x1]
    %v37 = vlaneseq
    %v38 = vshrl.u32 %v37, 7
    %v39 = vsub.s32 0, %v38
    %v40 = vrot.slane %v35, %v39
    %v42 = vmul.f32 %v40, %v34
    %43 = vst.msk [vmem:[#allocation5] sm:$0xff] %vm26, %v42
    // Predicated region
    $region14: #{tpu_custom_call.1} parent=1 // pred_check
      _
    $region15: #{tpu_custom_call.1} parent=1 // pred_check_branch
      %45 = sbr.rel (0) target = $region17
    $region16: #{tpu_custom_call.1} parent=1 // pred_region
      %s47 = ssub.s32 128, 128
      %48 = vsyncadd [#allocation4], %s47
      %s50 = sshll.u32 [#allocation5], 4
      %s51 = int_to_ptr.vmem [resolvable:$true] %s50
      %53 = dma.vmem_to_hbm [thread:$0]  %s51, 128, %s2, [#allocation4]
    $region17: #{tpu_custom_call.1} parent=1 // pred_fallthru
      _
    // Predicated region
    $region18: #{tpu_custom_call.1} parent=1 // pred_check
      _
    $region19: #{tpu_custom_call.1} parent=1 // pred_check_branch
      %55 = sbr.rel (0) target = $region21
    $region20: #{tpu_custom_call.1} parent=1 // pred_region
      %56 = dma.done [#allocation4], 128
    $region21: #{tpu_custom_call.1} parent=1 // pred_fallthru
      _
    %57 = vsyncpa [#allocation3], 1
    %58 = vsyncpa [#allocation4], 1

</llo_original>
